<compile_context>
chip_gen: v7x
topology: tpu7x:2x2x1
jax: 0.10.0
libtpu: 0.0.40
codegen_flags: <defaults>
</compile_context>

<pallas_src>
import functools

import jax
import jax.numpy as jnp
from jax.experimental import pallas as pl
from jax.experimental.pallas import tpu as pltpu


def _round_up(n: int, m: int) -> int:
    return ((n + m - 1) // m) * m


def _hgrn2_mlp_kernel(x_ref, wg_ref, wu_ref, wd_ref, o_ref, acc_ref):
    # x_ref  : (tm, hidden_p)   token tile (constant across the j axis)
    # wg_ref : (hidden_p, tn)   gate_proj weight slice (transposed)
    # wu_ref : (hidden_p, tn)   up_proj weight slice (transposed)
    # wd_ref : (tn, hidden_p)   down_proj weight slice (transposed)
    # o_ref  : (tm, hidden_p)   output tile (resident across j)
    # acc_ref: (tm, hidden_p)   f32 accumulator scratch
    j = pl.program_id(1)

    @pl.when(j == 0)
    def _():
        acc_ref[...] = jnp.zeros_like(acc_ref)

    x = x_ref[...]
    g = jnp.dot(x, wg_ref[...], preferred_element_type=jnp.float32)
    u = jnp.dot(x, wu_ref[...], preferred_element_type=jnp.float32)

    # swish / SiLU in f32 for accuracy (sigmoid goes to the EUP slot).
    h = (g * jax.nn.sigmoid(g)) * u

    acc_ref[...] += jnp.dot(h.astype(wd_ref.dtype), wd_ref[...],
                            preferred_element_type=jnp.float32)

    @pl.when(j == pl.num_programs(1) - 1)
    def _():
        o_ref[...] = acc_ref[...].astype(o_ref.dtype)


@functools.partial(jax.jit, static_argnames=("block_m", "block_n"))
def hgrn2_mlp(hidden_state, wg_t, wu_t, wd_t, *, block_m=256, block_n=512):
    """HGRN2MLP forward: down_proj(silu(gate_proj(x)) * up_proj(x)).

    hidden_state: (batch, seq, hidden)
    wg_t, wu_t  : (hidden, inter)   (nn.Linear weight, transposed)
    wd_t        : (inter, hidden)
    """
    b, s, hidden = hidden_state.shape
    inter = wg_t.shape[1]
    in_dtype = hidden_state.dtype

    m = b * s

    # Lane-dense feature dims (multiples of 128); sublane-friendly row tile.
    hidden_p = _round_up(hidden, 128)
    tn = _round_up(min(block_n, _round_up(inter, 128)), 128)
    inter_p = _round_up(inter, tn)

    tm = _round_up(min(block_m, _round_up(m, 16)), 16)
    m_p = _round_up(m, tm)

    # Zero-pad inputs/weights.  Padding is exact: padded x columns hit zero
    # weight rows; padded inter columns give g=u=0 so silu(0)*0 = 0 contributes
    # nothing to the down projection; padded rows/columns are sliced off below.
    x2d = hidden_state.reshape(m, hidden)
    x2d = jnp.pad(x2d, ((0, m_p - m), (0, hidden_p - hidden)))
    wg_p = jnp.pad(wg_t, ((0, hidden_p - hidden), (0, inter_p - inter)))
    wu_p = jnp.pad(wu_t, ((0, hidden_p - hidden), (0, inter_p - inter)))
    wd_p = jnp.pad(wd_t, ((0, inter_p - inter), (0, hidden_p - hidden)))

    grid = (m_p // tm, inter_p // tn)

    # VMEM budget (double-buffered inputs/outputs + accumulator + f32
    # intermediates), with margin, capped at 64 MiB (v7x physical VMEM).
    act_b = jnp.dtype(in_dtype).itemsize
    w_b = jnp.dtype(wg_t.dtype).itemsize
    est = (2 * tm * hidden_p * act_b          # x tiles
           + 2 * 2 * hidden_p * tn * w_b      # wg, wu tiles
           + 2 * tn * hidden_p * w_b          # wd tiles
           + 2 * tm * hidden_p * act_b        # out tiles
           + tm * hidden_p * 4                # f32 accumulator
           + 3 * tm * tn * 4)                 # g / u / h intermediates
    vmem_limit = int(min(max(2 * est, 32 << 20), 64 << 20))

    cost = pl.CostEstimate(
        flops=6 * m_p * hidden_p * inter_p,
        transcendentals=m_p * inter_p,
        bytes_accessed=(x2d.size * act_b
                        + (wg_p.size + wu_p.size + wd_p.size) * w_b
                        + m_p * hidden_p * act_b),
    )

    out2d = pl.pallas_call(
        _hgrn2_mlp_kernel,
        out_shape=jax.ShapeDtypeStruct((m_p, hidden_p), in_dtype),
        grid_spec=pltpu.PrefetchScalarGridSpec(
            num_scalar_prefetch=0,
            grid=grid,
            in_specs=[
                pl.BlockSpec((tm, hidden_p), lambda i, j: (i, 0)),     # x
                pl.BlockSpec((hidden_p, tn), lambda i, j: (0, j)),     # Wg^T
                pl.BlockSpec((hidden_p, tn), lambda i, j: (0, j)),     # Wu^T
                pl.BlockSpec((tn, hidden_p), lambda i, j: (j, 0)),     # Wd^T
            ],
            out_specs=pl.BlockSpec((tm, hidden_p), lambda i, j: (i, 0)),
            scratch_shapes=[pltpu.VMEM((tm, hidden_p), jnp.float32)],
        ),
        compiler_params=pltpu.CompilerParams(
            dimension_semantics=("parallel", "arbitrary"),
            vmem_limit_bytes=vmem_limit,
        ),
        cost_estimate=cost,
    )(x2d, wg_p, wu_p, wd_p)

    return out2d[:m, :hidden].reshape(b, s, hidden)


def _reference(hidden_state, wg_t, wu_t, wd_t):
    x = hidden_state.astype(jnp.float32)
    g = x @ wg_t.astype(jnp.float32)
    u = x @ wu_t.astype(jnp.float32)
    h = jax.nn.silu(g) * u
    return (h @ wd_t.astype(jnp.float32)).astype(hidden_state.dtype)


if __name__ == "__main__":
    batch, seq = 2, 8
    hidden_size = 32
    intermediate_size = 64
    dtype = jnp.float32

    key = jax.random.PRNGKey(0)
    kx, kg, ku, kd = jax.random.split(key, 4)

    hidden_state = jax.random.normal(kx, (batch, seq, hidden_size), dtype=dtype)

    # nn.Linear(hidden, inter, bias=False) weight is (inter, hidden); we store
    # the transpose so the kernel can do plain row-major matmuls.
    scale_g = 1.0 / jnp.sqrt(hidden_size)
    scale_d = 1.0 / jnp.sqrt(intermediate_size)
    wg_t = jax.random.normal(kg, (hidden_size, intermediate_size), dtype=dtype) * scale_g
    wu_t = jax.random.normal(ku, (hidden_size, intermediate_size), dtype=dtype) * scale_g
    wd_t = jax.random.normal(kd, (intermediate_size, hidden_size), dtype=dtype) * scale_d

    out = hgrn2_mlp(hidden_state, wg_t, wu_t, wd_t)
    out = jax.block_until_ready(out)

    ref = _reference(hidden_state, wg_t, wu_t, wd_t)
    assert out.shape == (batch, seq, hidden_size)
    assert jnp.allclose(out, ref, atol=1e-4, rtol=1e-4), "mismatch vs reference"

    print("KERNEL_OK")
</pallas_src>

<mosaic_0001>
module attributes {stable_mosaic.version = 11 : i64} {
  func.func @_hgrn2_mlp_kernel(%arg0: i32, %arg1: i32, %arg2: memref<16x128xf32, #tpu.memory_space<vmem>>, %arg3: memref<128x128xf32, #tpu.memory_space<vmem>>, %arg4: memref<128x128xf32, #tpu.memory_space<vmem>>, %arg5: memref<128x128xf32, #tpu.memory_space<vmem>>, %arg6: memref<16x128xf32, #tpu.memory_space<vmem>>, %arg7: memref<16x128xf32, #tpu.memory_space<vmem>>) attributes {dimension_semantics = [#tpu.dimension_semantics<parallel>, #tpu.dimension_semantics<arbitrary>], iteration_bounds = array<i64: 1, 1>, scalar_prefetch = 0 : i64, scratch_operands = 1 : i64, tpu.core_type = #tpu.core_type<tc>, window_params = [{transform_indices = @transform_0, window_bounds = array<i64: 16, 128>}, {transform_indices = @transform_1, window_bounds = array<i64: 128, 128>}, {transform_indices = @transform_2, window_bounds = array<i64: 128, 128>}, {transform_indices = @transform_3, window_bounds = array<i64: 128, 128>}, {transform_indices = @transform_4, window_bounds = array<i64: 16, 128>}]} {
    %c0_i32 = arith.constant 0 : i32
    %0 = arith.cmpi eq, %arg1, %c0_i32 : i32
    %1 = arith.extui %0 : i1 to i32
    %c0_i32_0 = arith.constant 0 : i32
    %2 = arith.cmpi ne, %1, %c0_i32_0 : i32
    scf.if %2 {
      %cst_17 = arith.constant 0.000000e+00 : f32
      %23 = vector.broadcast %cst_17 : f32 to vector<16x128xf32>
      %c0_18 = arith.constant 0 : index
      %c0_19 = arith.constant 0 : index
      %24 = vector.load %arg7[%c0_18, %c0_19] : memref<16x128xf32, #tpu.memory_space<vmem>>, vector<16x128xf32>
      tpu.vector_store %arg7[%c0_18, %c0_19], %23 {strides = array<i32>} : memref<16x128xf32, #tpu.memory_space<vmem>>, vector<16x128xf32>,
    } else {
    }
    %c0 = arith.constant 0 : index
    %c0_1 = arith.constant 0 : index
    %3 = vector.load %arg2[%c0, %c0_1] : memref<16x128xf32, #tpu.memory_space<vmem>>, vector<16x128xf32>
    %c0_2 = arith.constant 0 : index
    %c0_3 = arith.constant 0 : index
    %4 = vector.load %arg3[%c0_2, %c0_3] : memref<128x128xf32, #tpu.memory_space<vmem>>, vector<128x128xf32>
    %cst = arith.constant dense<0.000000e+00> : vector<16x128xf32>
    %5 = tpu.matmul %3, %4, %cst {dimension_numbers = #tpu.dot_dimension_numbers<[1], [0], [0], [1], [0, 0, 1, 1], [], []>} : vector<16x128xf32>, vector<128x128xf32>, vector<16x128xf32> -> vector<16x128xf32>
    %c0_4 = arith.constant 0 : index
    %c0_5 = arith.constant 0 : index
    %6 = vector.load %arg4[%c0_4, %c0_5] : memref<128x128xf32, #tpu.memory_space<vmem>>, vector<128x128xf32>
    %cst_6 = arith.constant dense<0.000000e+00> : vector<16x128xf32>
    %7 = tpu.matmul %3, %6, %cst_6 {dimension_numbers = #tpu.dot_dimension_numbers<[1], [0], [0], [1], [0, 0, 1, 1], [], []>} : vector<16x128xf32>, vector<128x128xf32>, vector<16x128xf32> -> vector<16x128xf32>
    %8 = arith.negf %5 : vector<16x128xf32>
    %9 = math.exp %8 : vector<16x128xf32>
    %cst_7 = arith.constant 1.000000e+00 : f32
    %10 = vector.broadcast %cst_7 : f32 to vector<16x128xf32>
    %11 = arith.addf %10, %9 : vector<16x128xf32>
    %12 = arith.divf %10, %11 : vector<16x128xf32>
    %13 = arith.mulf %5, %12 : vector<16x128xf32>
    %14 = arith.mulf %13, %7 : vector<16x128xf32>
    %c0_8 = arith.constant 0 : index
    %c0_9 = arith.constant 0 : index
    %15 = vector.load %arg7[%c0_8, %c0_9] : memref<16x128xf32, #tpu.memory_space<vmem>>, vector<16x128xf32>
    %c0_10 = arith.constant 0 : index
    %c0_11 = arith.constant 0 : index
    %16 = vector.load %arg5[%c0_10, %c0_11] : memref<128x128xf32, #tpu.memory_space<vmem>>, vector<128x128xf32>
    %cst_12 = arith.constant dense<0.000000e+00> : vector<16x128xf32>
    %17 = tpu.matmul %14, %16, %cst_12 {dimension_numbers = #tpu.dot_dimension_numbers<[1], [0], [0], [1], [0, 0, 1, 1], [], []>} : vector<16x128xf32>, vector<128x128xf32>, vector<16x128xf32> -> vector<16x128xf32>
    %18 = arith.addf %15, %17 : vector<16x128xf32>
    %c0_13 = arith.constant 0 : index
    %c0_14 = arith.constant 0 : index
    %19 = vector.load %arg7[%c0_13, %c0_14] : memref<16x128xf32, #tpu.memory_space<vmem>>, vector<16x128xf32>
    tpu.vector_store %arg7[%c0_13, %c0_14], %18 {strides = array<i32>} : memref<16x128xf32, #tpu.memory_space<vmem>>, vector<16x128xf32>,
    %c0_i32_15 = arith.constant 0 : i32
    %20 = arith.cmpi eq, %arg1, %c0_i32_15 : i32
    %21 = arith.extui %20 : i1 to i32
    %c0_i32_16 = arith.constant 0 : i32
    %22 = arith.cmpi ne, %21, %c0_i32_16 : i32
    scf.if %22 {
      %c0_17 = arith.constant 0 : index
      %c0_18 = arith.constant 0 : index
      %23 = vector.load %arg7[%c0_17, %c0_18] : memref<16x128xf32, #tpu.memory_space<vmem>>, vector<16x128xf32>
      %c0_19 = arith.constant 0 : index
      %c0_20 = arith.constant 0 : index
      %24 = vector.load %arg6[%c0_19, %c0_20] : memref<16x128xf32, #tpu.memory_space<vmem>>, vector<16x128xf32>
      tpu.vector_store %arg6[%c0_19, %c0_20], %23 {strides = array<i32>} : memref<16x128xf32, #tpu.memory_space<vmem>>, vector<16x128xf32>,
    } else {
    }
    return
  }
  func.func @transform_0(%arg0: i32, %arg1: i32) -> (i32, i32) {
    %c0_i32 = arith.constant 0 : i32
    %c0_i32_0 = arith.constant 0 : i32
    return %arg0, %c0_i32 : i32, i32
  }
  func.func @transform_1(%arg0: i32, %arg1: i32) -> (i32, i32) {
    %c0_i32 = arith.constant 0 : i32
    %c0_i32_0 = arith.constant 0 : i32
    return %c0_i32, %arg1 : i32, i32
  }
  func.func @transform_2(%arg0: i32, %arg1: i32) -> (i32, i32) {
    %c0_i32 = arith.constant 0 : i32
    %c0_i32_0 = arith.constant 0 : i32
    return %c0_i32, %arg1 : i32, i32
  }
  func.func @transform_3(%arg0: i32, %arg1: i32) -> (i32, i32) {
    %c0_i32 = arith.constant 0 : i32
    %c0_i32_0 = arith.constant 0 : i32
    return %arg1, %c0_i32 : i32, i32
  }
  func.func @transform_4(%arg0: i32, %arg1: i32) -> (i32, i32) {
    %c0_i32 = arith.constant 0 : i32
    %c0_i32_0 = arith.constant 0 : i32
    return %arg0, %c0_i32 : i32, i32
  }
}

</mosaic_0001>

<llo_original>
// kernel: hgrn2_mlp.1
$region0: #{hgrn2_mlp.1}
  #allocation0 [shape = 'u32[]', space=smem, size = 0x4, offset = 0x4, fixed_abs, tag = 'smem constant byte address 0x4 - core index']
  #allocation1 [shape = 'u32[144,128]{1,0:T(1,128)}', space=vmem, size = 0x12000, scoped, tag = 'internal scratch']
  #allocation2 [shape = 'f32[16,128]{1,0:T(8,128)}', space=vmem, size = 0x2000, scoped, tag = 'scratch operand']
  %s0 = inlined_call_operand.vmem [shape: f32[16,128], index: 0, kind: input, shape index: {}]
  %s1 = inlined_call_operand.vmem [shape: f32[128,128], index: 1, kind: input, shape index: {}]
  %s2 = inlined_call_operand.vmem [shape: f32[128,128], index: 2, kind: input, shape index: {}]
  %s3 = inlined_call_operand.vmem [shape: f32[128,128], index: 3, kind: input, shape index: {}]
  %s4 = inlined_call_operand.vmem [shape: f32[16,128], index: 4, kind: output, shape index: {}]
  %s5 = sld [smem:[#allocation0]]
  $region34: #{hgrn2_mlp.1} parent=0
    _
  %s7 = ssub.s32 1, %s5
  %s8 = scalar_select 0, %s7, %s5
  // Predicated region
  $region2: #{hgrn2_mlp.1} parent=0 // pred_check
    _
  $region3: #{hgrn2_mlp.1} parent=0 // pred_check_branch
    %10 = sbr.rel (0) target = $region5
  $region4: #{hgrn2_mlp.1} parent=0 // pred_region
    _
  $region5: #{hgrn2_mlp.1} parent=0 // pred_fallthru
    _
  // Predicated region
  $region6: #{hgrn2_mlp.1} parent=0 // pred_check
    _
  $region7: #{hgrn2_mlp.1} parent=0 // pred_check_branch
    %12 = sbr.rel (0) target = $region9
  $region8: #{hgrn2_mlp.1} parent=0 // pred_region
    _
  $region9: #{hgrn2_mlp.1} parent=0 // pred_fallthru
    _
  // Predicated region
  $region10: #{hgrn2_mlp.1} parent=0 // pred_check
    _
  $region11: #{hgrn2_mlp.1} parent=0 // pred_check_branch
    %14 = sbr.rel (0) target = $region13
  $region12: #{hgrn2_mlp.1} parent=0 // pred_region
    _
  $region13: #{hgrn2_mlp.1} parent=0 // pred_fallthru
    _
  // Predicated region
  $region14: #{hgrn2_mlp.1} parent=0 // pred_check
    _
  $region15: #{hgrn2_mlp.1} parent=0 // pred_check_branch
    %16 = sbr.rel (0) target = $region17
  $region16: #{hgrn2_mlp.1} parent=0 // pred_region
    _
  $region17: #{hgrn2_mlp.1} parent=0 // pred_fallthru
    _
  %p17 = scmp.eq.s32.totalorder 0, 0
  // Predicated region
  $region18: #{hgrn2_mlp.1} parent=0 // pred_check
    %p18 = pneg %p17
  $region19: #{hgrn2_mlp.1} parent=0 // pred_check_branch
    %20 = sbr.rel (%p18) target = $region21
  $region20: #{hgrn2_mlp.1} parent=0 // pred_region
    %21 = vst [vmem:[#allocation2] sm:$0xff] 0.0
    %22 = vst [vmem:[#allocation2 + $0x8] sm:$0xff] 0.0
  $region21: #{hgrn2_mlp.1} parent=0 // pred_fallthru
    _
  %v23 = vld [vmem:[%s0] sm:$0xff]
  %v24 = vld [vmem:[%s0 + $0x8] sm:$0xff]
  %v25 = vld [vmem:[%s1] sm:$0xff]
  %v26 = vld [vmem:[%s1 + $0x8] sm:$0xff]
  %v27 = vld [vmem:[%s1 + $0x10] sm:$0xff]
  %v28 = vld [vmem:[%s1 + $0x18] sm:$0xff]
  %v29 = vld [vmem:[%s1 + $0x20] sm:$0xff]
  %v30 = vld [vmem:[%s1 + $0x28] sm:$0xff]
  %v31 = vld [vmem:[%s1 + $0x30] sm:$0xff]
  %v32 = vld [vmem:[%s1 + $0x38] sm:$0xff]
  %v33 = vld [vmem:[%s1 + $0x40] sm:$0xff]
  %v34 = vld [vmem:[%s1 + $0x48] sm:$0xff]
  %v35 = vld [vmem:[%s1 + $0x50] sm:$0xff]
  %v36 = vld [vmem:[%s1 + $0x58] sm:$0xff]
  %v37 = vld [vmem:[%s1 + $0x60] sm:$0xff]
  %v38 = vld [vmem:[%s1 + $0x68] sm:$0xff]
  %v39 = vld [vmem:[%s1 + $0x70] sm:$0xff]
  %v40 = vld [vmem:[%s1 + $0x78] sm:$0xff]
  %41 = vmatprep.subr.mxu0 0.0
  %42 = vmatpush1.msra.mxu0 %v25
  %43 = vmatprep.subr.mxu0 0.0
  %44 = vmatpush1.msra.mxu0 %v26
  %45 = vmatprep.subr.mxu0 0.0
  %46 = vmatpush1.msra.mxu0 %v27
  %47 = vmatprep.subr.mxu0 0.0
  %48 = vmatpush1.msra.mxu0 %v28
  %49 = vmatprep.subr.mxu0 0.0
  %50 = vmatpush1.msra.mxu0 %v29
  %51 = vmatprep.subr.mxu0 0.0
  %52 = vmatpush1.msra.mxu0 %v30
  %53 = vmatprep.subr.mxu0 0.0
  %54 = vmatpush1.msra.mxu0 %v31
  %55 = vmatprep.subr.mxu0 0.0
  %56 = vmatpush1.msra.mxu0 %v32
  %57 = vmatprep.subr.mxu0 0.0
  %58 = vmatpush1.msra.mxu0 %v33
  %59 = vmatprep.subr.mxu0 0.0
  %60 = vmatpush1.msra.mxu0 %v34
  %61 = vmatprep.subr.mxu0 0.0
  %62 = vmatpush1.msra.mxu0 %v35
  %63 = vmatprep.subr.mxu0 0.0
  %64 = vmatpush1.msra.mxu0 %v36
  %65 = vmatprep.subr.mxu0 0.0
  %66 = vmatpush1.msra.mxu0 %v37
  %67 = vmatprep.subr.mxu0 0.0
  %68 = vmatpush1.msra.mxu0 %v38
  %69 = vmatprep.subr.mxu0 0.0
  %70 = vmatpush1.msra.mxu0 %v39
  %71 = vmatprep.subr.mxu0 0.0
  %72 = vmatpush1.msra.mxu0 %v40
  %73 = vmatprep.subr.mxu0 0.0
  %74 = vmatpush1.msra.mxu0 0.0
  %75 = vmatprep.subr.mxu0 0.0
  %76 = vmatpush1.msra.mxu0 0.0
  %77 = vmatprep.subr.mxu0 0.0
  %78 = vmatpush1.msra.mxu0 0.0
  %79 = vmatprep.subr.mxu0 0.0
  %80 = vmatpush1.msra.mxu0 0.0
  %81 = vmatprep.subr.mxu0 0.0
  %82 = vmatpush1.msra.mxu0 0.0
  %83 = vmatprep.subr.mxu0 0.0
  %84 = vmatpush1.msra.mxu0 0.0
  %85 = vmatprep.subr.mxu0 0.0
  %86 = vmatpush1.msra.mxu0 0.0
  %87 = vmatprep.subr.mxu0 0.0
  %88 = vmatpush1.msra.mxu0 0.0
  %89 = vmatprep.subr.mxu0 0.0
  %90 = vmatpush1.msra.mxu0 0.0
  %91 = vmatprep.subr.mxu0 0.0
  %92 = vmatpush1.msra.mxu0 0.0
  %93 = vmatprep.subr.mxu0 0.0
  %94 = vmatpush1.msra.mxu0 0.0
  %95 = vmatprep.subr.mxu0 0.0
  %96 = vmatpush1.msra.mxu0 0.0
  %97 = vmatprep.subr.mxu0 0.0
  %98 = vmatpush1.msra.mxu0 0.0
  %99 = vmatprep.subr.mxu0 0.0
  %100 = vmatpush1.msra.mxu0 0.0
  %101 = vmatprep.subr.mxu0 0.0
  %102 = vmatpush1.msra.mxu0 0.0
  %103 = vmatprep.subr.mxu0 0.0
  %104 = vmatpush1.msra.mxu0 0.0
  %105 = vmatprep.mubr.f32.mxu0 0.0
  %106 = vmatmul.mubr.f32.gmra.mrb[0].mxu0 %v23
  %v107 = vpop.f32.mrb[0].mxu0
  %v108 = vadd.f32 0.0, %v107
  %v109 = vpop.f32.mrb[0].mxu0
  %110 = vmatprep.mubr.f32.mxu0 0.0
  %111 = vmatmul.mubr.f32.gmra.mrb[0].mxu0 %v24
  %v112 = vpop.f32.mrb[0].mxu0
  %v113 = vadd.f32 0.0, %v112
  %v114 = vpop.f32.mrb[0].mxu0
  %115 = vdwg.mxu0
  %v116 = vld [vmem:[%s2] sm:$0xff]
  %v117 = vld [vmem:[%s2 + $0x8] sm:$0xff]
  %v118 = vld [vmem:[%s2 + $0x10] sm:$0xff]
  %v119 = vld [vmem:[%s2 + $0x18] sm:$0xff]
  %v120 = vld [vmem:[%s2 + $0x20] sm:$0xff]
  %v121 = vld [vmem:[%s2 + $0x28] sm:$0xff]
  %v122 = vld [vmem:[%s2 + $0x30] sm:$0xff]
  %v123 = vld [vmem:[%s2 + $0x38] sm:$0xff]
  %v124 = vld [vmem:[%s2 + $0x40] sm:$0xff]
  %v125 = vld [vmem:[%s2 + $0x48] sm:$0xff]
  %v126 = vld [vmem:[%s2 + $0x50] sm:$0xff]
  %v127 = vld [vmem:[%s2 + $0x58] sm:$0xff]
  %v128 = vld [vmem:[%s2 + $0x60] sm:$0xff]
  %v129 = vld [vmem:[%s2 + $0x68] sm:$0xff]
  %v130 = vld [vmem:[%s2 + $0x70] sm:$0xff]
  %v131 = vld [vmem:[%s2 + $0x78] sm:$0xff]
  %132 = vmatprep.subr.mxu0 0.0
  %133 = vmatpush1.msra.mxu0 %v116
  %134 = vmatprep.subr.mxu0 0.0
  %135 = vmatpush1.msra.mxu0 %v117
  %136 = vmatprep.subr.mxu0 0.0
  %137 = vmatpush1.msra.mxu0 %v118
  %138 = vmatprep.subr.mxu0 0.0
  %139 = vmatpush1.msra.mxu0 %v119
  %140 = vmatprep.subr.mxu0 0.0
  %141 = vmatpush1.msra.mxu0 %v120
  %142 = vmatprep.subr.mxu0 0.0
  %143 = vmatpush1.msra.mxu0 %v121
  %144 = vmatprep.subr.mxu0 0.0
  %145 = vmatpush1.msra.mxu0 %v122
  %146 = vmatprep.subr.mxu0 0.0
  %147 = vmatpush1.msra.mxu0 %v123
  %148 = vmatprep.subr.mxu0 0.0
  %149 = vmatpush1.msra.mxu0 %v124
  %150 = vmatprep.subr.mxu0 0.0
  %151 = vmatpush1.msra.mxu0 %v125
  %152 = vmatprep.subr.mxu0 0.0
  %153 = vmatpush1.msra.mxu0 %v126
  %154 = vmatprep.subr.mxu0 0.0
  %155 = vmatpush1.msra.mxu0 %v127
  %156 = vmatprep.subr.mxu0 0.0
  %157 = vmatpush1.msra.mxu0 %v128
  %158 = vmatprep.subr.mxu0 0.0
  %159 = vmatpush1.msra.mxu0 %v129
  %160 = vmatprep.subr.mxu0 0.0
  %161 = vmatpush1.msra.mxu0 %v130
  %162 = vmatprep.subr.mxu0 0.0
  %163 = vmatpush1.msra.mxu0 %v131
  %164 = vmatprep.subr.mxu0 0.0
  %165 = vmatpush1.msra.mxu0 0.0
  %166 = vmatprep.subr.mxu0 0.0
  %167 = vmatpush1.msra.mxu0 0.0
  %168 = vmatprep.subr.mxu0 0.0
  %169 = vmatpush1.msra.mxu0 0.0
  %170 = vmatprep.subr.mxu0 0.0
  %171 = vmatpush1.msra.mxu0 0.0
  %172 = vmatprep.subr.mxu0 0.0
  %173 = vmatpush1.msra.mxu0 0.0
  %174 = vmatprep.subr.mxu0 0.0
  %175 = vmatpush1.msra.mxu0 0.0
  %176 = vmatprep.subr.mxu0 0.0
  %177 = vmatpush1.msra.mxu0 0.0
  %178 = vmatprep.subr.mxu0 0.0
  %179 = vmatpush1.msra.mxu0 0.0
  %180 = vmatprep.subr.mxu0 0.0
  %181 = vmatpush1.msra.mxu0 0.0
  %182 = vmatprep.subr.mxu0 0.0
  %183 = vmatpush1.msra.mxu0 0.0
  %184 = vmatprep.subr.mxu0 0.0
  %185 = vmatpush1.msra.mxu0 0.0
  %186 = vmatprep.subr.mxu0 0.0
  %187 = vmatpush1.msra.mxu0 0.0
  %188 = vmatprep.subr.mxu0 0.0
  %189 = vmatpush1.msra.mxu0 0.0
  %190 = vmatprep.subr.mxu0 0.0
  %191 = vmatpush1.msra.mxu0 0.0
  %192 = vmatprep.subr.mxu0 0.0
  %193 = vmatpush1.msra.mxu0 0.0
  %194 = vmatprep.subr.mxu0 0.0
  %195 = vmatpush1.msra.mxu0 0.0
  %196 = vmatprep.mubr.f32.mxu0 0.0
  %197 = vmatmul.mubr.f32.gmra.mrb[0].mxu0 %v23
  %v198 = vpop.f32.mrb[0].mxu0
  %v199 = vadd.f32 0.0, %v198
  %v200 = vpop.f32.mrb[0].mxu0
  %201 = vmatprep.mubr.f32.mxu0 0.0
  %202 = vmatmul.mubr.f32.gmra.mrb[0].mxu0 %v24
  %v203 = vpop.f32.mrb[0].mxu0
  %v204 = vadd.f32 0.0, %v203
  %v205 = vpop.f32.mrb[0].mxu0
  %206 = vdwg.mxu0
  %v207 = vxor.u32 %v108, 2147483648
  %v208 = vxor.u32 %v113, 2147483648
  %v209 = vmul.f32 %v207, 1.442695
  %v210 = vpow.pop %v209
  %v211 = vmul.f32 %v208, 1.442695
  %v212 = vpow.pop %v211
  %v213 = vadd.f32 %v210, 1.0
  %v214 = vadd.f32 %v212, 1.0
  %v215 = vrcp.pop %v213
  %v216 = vmul.f32 1.0, %v215
  %v217 = vrcp.pop %v214
  %v218 = vmul.f32 1.0, %v217
  %v219 = vmul.f32 %v108, %v216
  %v220 = vmul.f32 %v113, %v218
  %v221 = vmul.f32 %v219, %v199
  %v222 = vmul.f32 %v220, %v204
  %v223 = vld [vmem:[#allocation2] sm:$0xff]
  %v224 = vld [vmem:[#allocation2 + $0x8] sm:$0xff]
  %v225 = vld [vmem:[%s3] sm:$0xff]
  %v226 = vld [vmem:[%s3 + $0x8] sm:$0xff]
  %v227 = vld [vmem:[%s3 + $0x10] sm:$0xff]
  %v228 = vld [vmem:[%s3 + $0x18] sm:$0xff]
  %v229 = vld [vmem:[%s3 + $0x20] sm:$0xff]
  %v230 = vld [vmem:[%s3 + $0x28] sm:$0xff]
  %v231 = vld [vmem:[%s3 + $0x30] sm:$0xff]
  %v232 = vld [vmem:[%s3 + $0x38] sm:$0xff]
  %v233 = vld [vmem:[%s3 + $0x40] sm:$0xff]
  %v234 = vld [vmem:[%s3 + $0x48] sm:$0xff]
  %v235 = vld [vmem:[%s3 + $0x50] sm:$0xff]
  %v236 = vld [vmem:[%s3 + $0x58] sm:$0xff]
  %v237 = vld [vmem:[%s3 + $0x60] sm:$0xff]
  %v238 = vld [vmem:[%s3 + $0x68] sm:$0xff]
  %v239 = vld [vmem:[%s3 + $0x70] sm:$0xff]
  %v240 = vld [vmem:[%s3 + $0x78] sm:$0xff]
  %241 = vmatprep.subr.mxu0 0.0
  %242 = vmatpush1.msra.mxu0 %v225
  %243 = vmatprep.subr.mxu0 0.0
  %244 = vmatpush1.msra.mxu0 %v226
  %245 = vmatprep.subr.mxu0 0.0
  %246 = vmatpush1.msra.mxu0 %v227
  %247 = vmatprep.subr.mxu0 0.0
  %248 = vmatpush1.msra.mxu0 %v228
  %249 = vmatprep.subr.mxu0 0.0
  %250 = vmatpush1.msra.mxu0 %v229
  %251 = vmatprep.subr.mxu0 0.0
  %252 = vmatpush1.msra.mxu0 %v230
  %253 = vmatprep.subr.mxu0 0.0
  %254 = vmatpush1.msra.mxu0 %v231
  %255 = vmatprep.subr.mxu0 0.0
  %256 = vmatpush1.msra.mxu0 %v232
  %257 = vmatprep.subr.mxu0 0.0
  %258 = vmatpush1.msra.mxu0 %v233
  %259 = vmatprep.subr.mxu0 0.0
  %260 = vmatpush1.msra.mxu0 %v234
  %261 = vmatprep.subr.mxu0 0.0
  %262 = vmatpush1.msra.mxu0 %v235
  %263 = vmatprep.subr.mxu0 0.0
  %264 = vmatpush1.msra.mxu0 %v236
  %265 = vmatprep.subr.mxu0 0.0
  %266 = vmatpush1.msra.mxu0 %v237
  %267 = vmatprep.subr.mxu0 0.0
  %268 = vmatpush1.msra.mxu0 %v238
  %269 = vmatprep.subr.mxu0 0.0
  %270 = vmatpush1.msra.mxu0 %v239
  %271 = vmatprep.subr.mxu0 0.0
  %272 = vmatpush1.msra.mxu0 %v240
  %273 = vmatprep.subr.mxu0 0.0
  %274 = vmatpush1.msra.mxu0 0.0
  %275 = vmatprep.subr.mxu0 0.0
  %276 = vmatpush1.msra.mxu0 0.0
  %277 = vmatprep.subr.mxu0 0.0
  %278 = vmatpush1.msra.mxu0 0.0
  %279 = vmatprep.subr.mxu0 0.0
  %280 = vmatpush1.msra.mxu0 0.0
  %281 = vmatprep.subr.mxu0 0.0
  %282 = vmatpush1.msra.mxu0 0.0
  %283 = vmatprep.subr.mxu0 0.0
  %284 = vmatpush1.msra.mxu0 0.0
  %285 = vmatprep.subr.mxu0 0.0
  %286 = vmatpush1.msra.mxu0 0.0
  %287 = vmatprep.subr.mxu0 0.0
  %288 = vmatpush1.msra.mxu0 0.0
  %289 = vmatprep.subr.mxu0 0.0
  %290 = vmatpush1.msra.mxu0 0.0
  %291 = vmatprep.subr.mxu0 0.0
  %292 = vmatpush1.msra.mxu0 0.0
  %293 = vmatprep.subr.mxu0 0.0
  %294 = vmatpush1.msra.mxu0 0.0
  %295 = vmatprep.subr.mxu0 0.0
  %296 = vmatpush1.msra.mxu0 0.0
  %297 = vmatprep.subr.mxu0 0.0
  %298 = vmatpush1.msra.mxu0 0.0
  %299 = vmatprep.subr.mxu0 0.0
  %300 = vmatpush1.msra.mxu0 0.0
  %301 = vmatprep.subr.mxu0 0.0
  %302 = vmatpush1.msra.mxu0 0.0
  %303 = vmatprep.subr.mxu0 0.0
  %304 = vmatpush1.msra.mxu0 0.0
  %305 = vmatprep.mubr.f32.mxu0 0.0
  %306 = vmatmul.mubr.f32.gmra.mrb[0].mxu0 %v221
  %v307 = vpop.f32.mrb[0].mxu0
  %v308 = vadd.f32 0.0, %v307
  %v309 = vpop.f32.mrb[0].mxu0
  %310 = vmatprep.mubr.f32.mxu0 0.0
  %311 = vmatmul.mubr.f32.gmra.mrb[0].mxu0 %v222
  %v312 = vpop.f32.mrb[0].mxu0
  %v313 = vadd.f32 0.0, %v312
  %v314 = vpop.f32.mrb[0].mxu0
  %315 = vdwg.mxu0
  %v316 = vadd.f32 %v223, %v308
  %v317 = vadd.f32 %v224, %v313
  %318 = vst [vmem:[#allocation2] sm:$0xff] %v316
  %319 = vst [vmem:[#allocation2 + $0x8] sm:$0xff] %v317
  // Predicated region
  $region22: #{hgrn2_mlp.1} parent=0 // pred_check
    %p320 = pneg %p17
  $region23: #{hgrn2_mlp.1} parent=0 // pred_check_branch
    %322 = sbr.rel (%p320) target = $region25
  $region24: #{hgrn2_mlp.1} parent=0 // pred_region
    %v323 = vld [vmem:[#allocation2] sm:$0xff]
    %v324 = vld [vmem:[#allocation2 + $0x8] sm:$0xff]
    %325 = vst [vmem:[%s4] sm:$0xff] %v323
    %326 = vst [vmem:[%s4 + $0x8] sm:$0xff] %v324
  $region25: #{hgrn2_mlp.1} parent=0 // pred_fallthru
    _
  // Predicated region
  $region26: #{hgrn2_mlp.1} parent=0 // pred_check
    _
  $region27: #{hgrn2_mlp.1} parent=0 // pred_check_branch
    %328 = sbr.rel (0) target = $region29
  $region28: #{hgrn2_mlp.1} parent=0 // pred_region
    _
  $region29: #{hgrn2_mlp.1} parent=0 // pred_fallthru
    _
  // Predicated region
  $region30: #{hgrn2_mlp.1} parent=0 // pred_check
    _
  $region31: #{hgrn2_mlp.1} parent=0 // pred_check_branch
    %330 = sbr.rel (0) target = $region33
  $region32: #{hgrn2_mlp.1} parent=0 // pred_region
    _
  $region33: #{hgrn2_mlp.1} parent=0 // pred_fallthru
    _

</llo_original>
